<compile_context>
chip_gen: v6e
topology: v6e:2x2x1
jax: 0.10.0
libtpu: 0.0.40
codegen_flags: <defaults>
</compile_context>

<pallas_src>
import jax
import jax.numpy as jnp
import numpy as np
from jax.experimental import pallas as pl
from jax.experimental.pallas import tpu as pltpu

_LANE = 128


def _round_up(x: int, m: int) -> int:
    return ((x + m - 1) // m) * m


def _block_diag(blocks):
    """Dense block-diagonal stack of equally shaped 2-D blocks."""
    q = len(blocks)
    r, c = blocks[0].shape
    out = jnp.zeros((q * r, q * c), dtype=blocks[0].dtype)
    for i, b in enumerate(blocks):
        out = out.at[i * r:(i + 1) * r, i * c:(i + 1) * c].set(b)
    return out


def choose_mode(num_q_networks: int) -> str:
    """Lane-packed block-diag chain for twin-Q; per-network loop for Q > 2."""
    return "stacked" if num_q_networks > 2 else "packed"


def pack_params(weights, biases, obs_dim, mode):
    """Pack per-network stacked params for the Pallas kernel.

    weights: list of [Q, in_l, out_l] f32; biases: list of [Q, 1, out_l] f32.

    mode == "packed" (Q <= 2): lane-pack the ensemble
      [W0_state [O, Q*U] bf16, W0_action [A, Q*U] bf16, b0 [1, Q*U] f32,
       (W_hid [Q*U, Q*U] bf16 block-diag, b_hid [1, Q*U] f32) * (hidden-1),
       W_out [Q*U, 128k] bf16 (zero-padded cols), b_out [1, 128k] f32 (+inf pad)]

    mode == "stacked" (Q > 2): per-network weights, no O(Q^2) block-diag
      [W0_state [Q, O, U] bf16, W0_action [Q, A, U] bf16, b0 [Q, 1, U] f32,
       (W_hid [Q, U, U] bf16, b_hid [Q, 1, U] f32) * (hidden-1),
       W_out^T [Q, 1, U] f32 (VPU output layer), b_out [Q, 1, 1] f32]
    """
    num_layers = len(weights)
    assert num_layers >= 2, "expect at least one hidden layer + output layer"
    q = weights[0].shape[0]
    w0 = weights[0]  # [Q, O+A, U]

    if mode == "packed":
        w0s = jnp.concatenate([w0[i, :obs_dim, :] for i in range(q)], axis=-1)
        w0a = jnp.concatenate([w0[i, obs_dim:, :] for i in range(q)], axis=-1)
        b0 = jnp.concatenate([biases[0][i] for i in range(q)], axis=-1)
        packed = [w0s.astype(jnp.bfloat16), w0a.astype(jnp.bfloat16), b0]
        for l in range(1, num_layers - 1):
            wd = _block_diag([weights[l][i] for i in range(q)])
            packed.append(wd.astype(jnp.bfloat16))
            packed.append(jnp.concatenate([biases[l][i] for i in range(q)], axis=-1))
        w_out = _block_diag([weights[-1][i] for i in range(q)])          # [Q*U, Q]
        b_out = jnp.concatenate([biases[-1][i] for i in range(q)], axis=-1)  # [1, Q]
        cols = _round_up(q, _LANE)
        w_out = jnp.pad(w_out, ((0, 0), (0, cols - q)))                  # zero cols
        b_out = jnp.concatenate(
            [b_out, jnp.full((1, cols - q), jnp.inf, dtype=jnp.float32)], axis=-1)
        packed.append(w_out.astype(jnp.bfloat16))
        packed.append(b_out)
        return packed

    # "stacked": kernel loops over Q with per-network [Tb,U]@[U,U] dots.
    packed = [w0[:, :obs_dim, :].astype(jnp.bfloat16),
              w0[:, obs_dim:, :].astype(jnp.bfloat16),
              biases[0]]
    for l in range(1, num_layers - 1):
        packed.append(weights[l].astype(jnp.bfloat16))
        packed.append(biases[l])
    packed.append(jnp.transpose(weights[-1], (0, 2, 1)))   # [Q, 1, U] f32 (VPU path)
    packed.append(biases[-1])                               # [Q, 1, 1] f32
    return packed


def _make_packed_kernel(hidden_layers: int):
    """Single matmul chain over the lane-packed ensemble; min over Q lanes."""

    def kernel(s_ref, a_ref, w0s_ref, w0a_ref, b0_ref, *rest):
        o_ref = rest[-1]
        w_out_ref, b_out_ref = rest[-3], rest[-2]
        hid = rest[:-3]

        # Fused concat([state, action]) @ W0: split matmuls, f32 accumulate.
        h = (jnp.dot(s_ref[...], w0s_ref[...], preferred_element_type=jnp.float32)
             + jnp.dot(a_ref[...], w0a_ref[...], preferred_element_type=jnp.float32)
             + b0_ref[...])
        h = jnp.maximum(h, 0.0)

        for l in range(hidden_layers - 1):
            w = hid[2 * l][...]
            b = hid[2 * l + 1][...]
            h = jnp.maximum(
                jnp.dot(h.astype(w.dtype), w, preferred_element_type=jnp.float32) + b,
                0.0)

        # Output layer padded to a full 128-lane tile; +inf pad bias is ignored
        # by the lane-wise min.
        w_out = w_out_ref[...]
        v = (jnp.dot(h.astype(w_out.dtype), w_out,
                     preferred_element_type=jnp.float32) + b_out_ref[...])
        o_ref[...] = jnp.min(v, axis=-1, keepdims=True)      # compact [Tb, 1]

    return kernel


def _make_stacked_kernel(hidden_layers: int, num_q: int):
    """Per-network matmuls (no block-diag waste); running elementwise min."""

    def kernel(s_ref, a_ref, w0s_ref, w0a_ref, b0_ref, *rest):
        o_ref = rest[-1]
        wout_ref, bout_ref = rest[-3], rest[-2]
        hid = rest[:-3]

        s = s_ref[...]
        a = a_ref[...]
        min_v = None
        for qi in range(num_q):            # unrolled; Q is small
            h = (jnp.dot(s, w0s_ref[qi], preferred_element_type=jnp.float32)
                 + jnp.dot(a, w0a_ref[qi], preferred_element_type=jnp.float32)
                 + b0_ref[qi])
            h = jnp.maximum(h, 0.0)
            for l in range(hidden_layers - 1):
                w = hid[2 * l][qi]
                b = hid[2 * l + 1][qi]
                h = jnp.maximum(
                    jnp.dot(h.astype(w.dtype), w,
                            preferred_element_type=jnp.float32) + b, 0.0)
            # Output layer (out_dim == 1): VPU multiply + lane reduction instead
            # of an almost-empty MXU pass; stays f32.
            v = jnp.sum(h * wout_ref[qi], axis=-1, keepdims=True) + bout_ref[qi]
            min_v = v if min_v is None else jnp.minimum(min_v, v)
        o_ref[...] = min_v                                    # compact [Tb, 1]

    return kernel


def _choose_batch_tile(b: int):
    """Fat batch tiles, but >=2 grid steps once there is enough work (v7x TCs)."""
    bp8 = _round_up(max(b, 8), 8)
    if bp8 < 2 * _LANE:
        return bp8, bp8                       # single small tile
    tb = min(1024, _round_up(max(_LANE, bp8 // 4), _LANE))
    return tb, _round_up(bp8, tb)


def _vmem_limit_bytes(packed, tb, obs_dim, act_dim):
    weight_bytes = sum(int(np.prod(p.shape)) * p.dtype.itemsize for p in packed)
    widest = max(max(int(p.shape[-1]) for p in packed), _LANE)
    in_bytes = 2 * tb * (obs_dim + act_dim) * 2    # double-buffered bf16 inputs
    out_bytes = 2 * tb * _LANE * 4                 # (tb,1) block pads to a lane tile
    live = 6 * tb * widest * 4                     # f32 activations / temporaries
    need = int(1.25 * (2 * weight_bytes + in_bytes + out_bytes + live))
    try:
        cap = int(pltpu.get_tpu_info().vmem_capacity_bytes)
    except Exception:                              # pragma: no cover
        cap = 64 << 20                             # v7x-safe fallback
    return max(16 << 20, min(need, int(cap * 3 // 4)))


def _cost_estimate(bp, obs_dim, act_dim, packed, hidden_layers, num_q, mode):
    if mode == "packed":
        qu = int(packed[0].shape[1])
        out_cols = int(packed[-2].shape[1])
        per_row = (2 * (obs_dim + act_dim) * qu
                   + (hidden_layers - 1) * 2 * qu * qu
                   + 2 * qu * out_cols)
    else:
        u = int(packed[0].shape[2])
        per_row = num_q * (2 * (obs_dim + act_dim) * u
                           + (hidden_layers - 1) * 2 * u * u
                           + 2 * u)
    weight_bytes = sum(int(np.prod(p.shape)) * p.dtype.itemsize for p in packed)
    bytes_accessed = bp * (obs_dim + act_dim) * 2 + weight_bytes + bp * 4
    return pl.CostEstimate(flops=int(bp * per_row), transcendentals=0,
                           bytes_accessed=int(bytes_accessed))


def multiple_q_forward(state, action, packed_params, *, hidden_layers, num_q, mode):
    """Pallas forward of MultipleQFunctions.forward().

    state:  [B, obs_dim] f32,  action: [B, act_dim] f32
    packed_params: output of pack_params(..., mode)
    returns: [B, 1] f32 (elementwise min over the Q networks)
    """
    b, obs_dim = state.shape
    _, act_dim = action.shape

    tb, bp = _choose_batch_tile(b)
    # bf16 inputs halve HBM read traffic; accumulation stays f32 in-kernel.
    state = state.astype(jnp.bfloat16)
    action = action.astype(jnp.bfloat16)
    if bp != b:
        state = jnp.pad(state, ((0, bp - b), (0, 0)))
        action = jnp.pad(action, ((0, bp - b), (0, 0)))

    in_specs = [
        pl.BlockSpec((tb, obs_dim), lambda i: (i, 0)),
        pl.BlockSpec((tb, act_dim), lambda i: (i, 0)),
    ]
    for p in packed_params:
        # Grid-invariant resident weights (constant index_map -> fetched once).
        in_specs.append(pl.BlockSpec(p.shape, lambda i, n=p.ndim: (0,) * n))

    out_spec = pl.BlockSpec((tb, 1), lambda i: (i, 0))   # compact column output

    kernel = (_make_packed_kernel(hidden_layers) if mode == "packed"
              else _make_stacked_kernel(hidden_layers, num_q))

    out = pl.pallas_call(
        kernel,
        out_shape=jax.ShapeDtypeStruct((bp, 1), jnp.float32),
        grid_spec=pltpu.PrefetchScalarGridSpec(
            num_scalar_prefetch=0,
            grid=(bp // tb,),
            in_specs=in_specs,
            out_specs=out_spec,
        ),
        compiler_params=pltpu.CompilerParams(
            dimension_semantics=("parallel",),   # batch tiles shard across TCs (v7x)
            vmem_limit_bytes=_vmem_limit_bytes(packed_params, tb, obs_dim, act_dim),
        ),
        cost_estimate=_cost_estimate(bp, obs_dim, act_dim, packed_params,
                                     hidden_layers, num_q, mode),
    )(state, action, *packed_params)

    return out[:b]


def init_params(key, obs_dim, act_dim, units, hidden_layers, num_q):
    """Deterministic init of the stacked ensemble MLP parameters (PyTorch-style)."""
    dims = [obs_dim + act_dim] + [units] * hidden_layers + [1]
    weights, biases = [], []
    for l in range(len(dims) - 1):
        key, kw, kb = jax.random.split(key, 3)
        bound = 1.0 / np.sqrt(dims[l])
        w = jax.random.uniform(kw, (num_q, dims[l], dims[l + 1]),
                               minval=-bound, maxval=bound, dtype=jnp.float32)
        bvec = jax.random.uniform(kb, (num_q, 1, dims[l + 1]),
                                  minval=-bound, maxval=bound, dtype=jnp.float32)
        weights.append(w)
        biases.append(bvec)
    return weights, biases


def reference_forward(state, action, weights, biases):
    """Pure-JAX f32 reference for correctness checking."""
    x = jnp.concatenate([state, action], axis=-1)
    vals = []
    num_layers = len(weights)
    for qi in range(weights[0].shape[0]):
        h = x
        for l in range(num_layers):
            h = h @ weights[l][qi] + biases[l][qi]
            if l < num_layers - 1:
                h = jnp.maximum(h, 0.0)
        vals.append(h)
    return jnp.min(jnp.stack(vals, axis=0), axis=0)


def _run_case(key, obs_dim, act_dim, units, hidden_layers, num_q, batch):
    key, ks, ka, kp = jax.random.split(key, 4)
    state = jax.random.normal(ks, (batch, obs_dim), dtype=jnp.float32)
    action = jax.random.normal(ka, (batch, act_dim), dtype=jnp.float32)
    weights, biases = init_params(kp, obs_dim, act_dim, units, hidden_layers, num_q)

    mode = choose_mode(num_q)
    packed = pack_params(weights, biases, obs_dim, mode)
    out = multiple_q_forward(state, action, packed,
                             hidden_layers=hidden_layers, num_q=num_q, mode=mode)
    out = jax.block_until_ready(out)

    ref = reference_forward(state, action, weights, biases)
    # bf16 weights/inputs with f32 accumulation: tolerance loosened vs the pure
    # f32 reference (observed error is ~0.3-0.5% relative).
    np.testing.assert_allclose(np.asarray(out), np.asarray(ref),
                               rtol=5e-2, atol=5e-2)
    return key


if __name__ == "__main__":
    key = jax.random.PRNGKey(0)
    # Classic SAC twin-Q (Q=2): lane-packed block-diagonal single matmul chain.
    key = _run_case(key, obs_dim=24, act_dim=8, units=32,
                    hidden_layers=2, num_q=2, batch=8)
    # Larger ensemble (Q=4): per-network "stacked" path (no O(Q^2) block-diag).
    _run_case(key, obs_dim=24, act_dim=8, units=32,
              hidden_layers=2, num_q=4, batch=16)
    print("KERNEL_OK")
</pallas_src>

<mosaic_0001>
module attributes {stable_mosaic.version = 11 : i64} {
  func.func @kernel(%arg0: i32, %arg1: memref<8x24xbf16, #tpu.memory_space<vmem>>, %arg2: memref<8x8xbf16, #tpu.memory_space<vmem>>, %arg3: memref<24x64xbf16, #tpu.memory_space<vmem>>, %arg4: memref<8x64xbf16, #tpu.memory_space<vmem>>, %arg5: memref<1x64xf32, #tpu.memory_space<vmem>>, %arg6: memref<64x64xbf16, #tpu.memory_space<vmem>>, %arg7: memref<1x64xf32, #tpu.memory_space<vmem>>, %arg8: memref<64x128xbf16, #tpu.memory_space<vmem>>, %arg9: memref<1x128xf32, #tpu.memory_space<vmem>>, %arg10: memref<8x1xf32, #tpu.memory_space<vmem>>) attributes {dimension_semantics = [#tpu.dimension_semantics<parallel>], iteration_bounds = array<i64: 1>, scalar_prefetch = 0 : i64, scratch_operands = 0 : i64, tpu.core_type = #tpu.core_type<tc>, window_params = [{transform_indices = @transform_0, window_bounds = array<i64: 8, 24>}, {transform_indices = @transform_1, window_bounds = array<i64: 8, 8>}, {pipeline_mode = #tpu.pipeline_mode<synchronous>, transform_indices = @transform_2, window_bounds = array<i64: 24, 64>}, {pipeline_mode = #tpu.pipeline_mode<synchronous>, transform_indices = @transform_3, window_bounds = array<i64: 8, 64>}, {pipeline_mode = #tpu.pipeline_mode<synchronous>, transform_indices = @transform_4, window_bounds = array<i64: 1, 64>}, {pipeline_mode = #tpu.pipeline_mode<synchronous>, transform_indices = @transform_5, window_bounds = array<i64: 64, 64>}, {pipeline_mode = #tpu.pipeline_mode<synchronous>, transform_indices = @transform_6, window_bounds = array<i64: 1, 64>}, {pipeline_mode = #tpu.pipeline_mode<synchronous>, transform_indices = @transform_7, window_bounds = array<i64: 64, 128>}, {pipeline_mode = #tpu.pipeline_mode<synchronous>, transform_indices = @transform_8, window_bounds = array<i64: 1, 128>}, {transform_indices = @transform_9, window_bounds = array<i64: 8, 1>}]} {
    %c0 = arith.constant 0 : index
    %c0_0 = arith.constant 0 : index
    %0 = vector.load %arg1[%c0, %c0_0] : memref<8x24xbf16, #tpu.memory_space<vmem>>, vector<8x24xbf16>
    %c0_1 = arith.constant 0 : index
    %c0_2 = arith.constant 0 : index
    %1 = vector.load %arg3[%c0_1, %c0_2] : memref<24x64xbf16, #tpu.memory_space<vmem>>, vector<24x64xbf16>
    %cst = arith.constant dense<0.000000e+00> : vector<8x64xf32>
    %2 = tpu.matmul %0, %1, %cst {dimension_numbers = #tpu.dot_dimension_numbers<[1], [0], [0], [1], [0, 0, 1, 1], [], []>} : vector<8x24xbf16>, vector<24x64xbf16>, vector<8x64xf32> -> vector<8x64xf32>
    %c0_3 = arith.constant 0 : index
    %c0_4 = arith.constant 0 : index
    %3 = vector.load %arg2[%c0_3, %c0_4] : memref<8x8xbf16, #tpu.memory_space<vmem>>, vector<8x8xbf16>
    %c0_5 = arith.constant 0 : index
    %c0_6 = arith.constant 0 : index
    %4 = vector.load %arg4[%c0_5, %c0_6] : memref<8x64xbf16, #tpu.memory_space<vmem>>, vector<8x64xbf16>
    %cst_7 = arith.constant dense<0.000000e+00> : vector<8x64xf32>
    %5 = tpu.matmul %3, %4, %cst_7 {dimension_numbers = #tpu.dot_dimension_numbers<[1], [0], [0], [1], [0, 0, 1, 1], [], []>} : vector<8x8xbf16>, vector<8x64xbf16>, vector<8x64xf32> -> vector<8x64xf32>
    %6 = arith.addf %2, %5 : vector<8x64xf32>
    %c0_8 = arith.constant 0 : index
    %c0_9 = arith.constant 0 : index
    %7 = vector.load %arg5[%c0_8, %c0_9] : memref<1x64xf32, #tpu.memory_space<vmem>>, vector<1x64xf32>
    %8 = vector.broadcast %7 : vector<1x64xf32> to vector<8x64xf32>
    %9 = arith.addf %6, %8 : vector<8x64xf32>
    %cst_10 = arith.constant 0.000000e+00 : f32
    %10 = vector.broadcast %cst_10 : f32 to vector<8x64xf32>
    %11 = arith.maximumf %9, %10 : vector<8x64xf32>
    %c0_11 = arith.constant 0 : index
    %c0_12 = arith.constant 0 : index
    %12 = vector.load %arg6[%c0_11, %c0_12] : memref<64x64xbf16, #tpu.memory_space<vmem>>, vector<64x64xbf16>
    %c0_13 = arith.constant 0 : index
    %c0_14 = arith.constant 0 : index
    %13 = vector.load %arg7[%c0_13, %c0_14] : memref<1x64xf32, #tpu.memory_space<vmem>>, vector<1x64xf32>
    %14 = arith.truncf %11 : vector<8x64xf32> to vector<8x64xbf16>
    %cst_15 = arith.constant dense<0.000000e+00> : vector<8x64xf32>
    %15 = tpu.matmul %14, %12, %cst_15 {dimension_numbers = #tpu.dot_dimension_numbers<[1], [0], [0], [1], [0, 0, 1, 1], [], []>} : vector<8x64xbf16>, vector<64x64xbf16>, vector<8x64xf32> -> vector<8x64xf32>
    %16 = vector.broadcast %13 : vector<1x64xf32> to vector<8x64xf32>
    %17 = arith.addf %15, %16 : vector<8x64xf32>
    %cst_16 = arith.constant 0.000000e+00 : f32
    %18 = vector.broadcast %cst_16 : f32 to vector<8x64xf32>
    %19 = arith.maximumf %17, %18 : vector<8x64xf32>
    %c0_17 = arith.constant 0 : index
    %c0_18 = arith.constant 0 : index
    %20 = vector.load %arg8[%c0_17, %c0_18] : memref<64x128xbf16, #tpu.memory_space<vmem>>, vector<64x128xbf16>
    %21 = arith.truncf %19 : vector<8x64xf32> to vector<8x64xbf16>
    %cst_19 = arith.constant dense<0.000000e+00> : vector<8x128xf32>
    %22 = tpu.matmul %21, %20, %cst_19 {dimension_numbers = #tpu.dot_dimension_numbers<[1], [0], [0], [1], [0, 0, 1, 1], [], []>} : vector<8x64xbf16>, vector<64x128xbf16>, vector<8x128xf32> -> vector<8x128xf32>
    %c0_20 = arith.constant 0 : index
    %c0_21 = arith.constant 0 : index
    %23 = vector.load %arg9[%c0_20, %c0_21] : memref<1x128xf32, #tpu.memory_space<vmem>>, vector<1x128xf32>
    %24 = vector.broadcast %23 : vector<1x128xf32> to vector<8x128xf32>
    %25 = arith.addf %22, %24 : vector<8x128xf32>
    %cst_22 = arith.constant dense<0x7F800000> : vector<8xf32>
    %26 = vector.multi_reduction <minimumf>, %25, %cst_22 [1] : vector<8x128xf32> to vector<8xf32>
    %27 = vector.shape_cast %26 : vector<8xf32> to vector<8x1xf32>
    %c0_23 = arith.constant 0 : index
    %c0_24 = arith.constant 0 : index
    %28 = vector.load %arg10[%c0_23, %c0_24] : memref<8x1xf32, #tpu.memory_space<vmem>>, vector<8x1xf32>
    tpu.vector_store %arg10[%c0_23, %c0_24], %27 {strides = array<i32>} : memref<8x1xf32, #tpu.memory_space<vmem>>, vector<8x1xf32>,
    return
  }
  func.func @transform_0(%arg0: i32) -> (i32, i32) {
    %c0_i32 = arith.constant 0 : i32
    %c0_i32_0 = arith.constant 0 : i32
    return %arg0, %c0_i32 : i32, i32
  }
  func.func @transform_1(%arg0: i32) -> (i32, i32) {
    %c0_i32 = arith.constant 0 : i32
    %c0_i32_0 = arith.constant 0 : i32
    return %arg0, %c0_i32 : i32, i32
  }
  func.func @transform_2(%arg0: i32) -> (i32, i32) {
    %c0_i32 = arith.constant 0 : i32
    %c0_i32_0 = arith.constant 0 : i32
    %c0_i32_1 = arith.constant 0 : i32
    return %c0_i32, %c0_i32_0 : i32, i32
  }
  func.func @transform_3(%arg0: i32) -> (i32, i32) {
    %c0_i32 = arith.constant 0 : i32
    %c0_i32_0 = arith.constant 0 : i32
    %c0_i32_1 = arith.constant 0 : i32
    return %c0_i32, %c0_i32_0 : i32, i32
  }
  func.func @transform_4(%arg0: i32) -> (i32, i32) {
    %c0_i32 = arith.constant 0 : i32
    %c0_i32_0 = arith.constant 0 : i32
    %c0_i32_1 = arith.constant 0 : i32
    return %c0_i32, %c0_i32_0 : i32, i32
  }
  func.func @transform_5(%arg0: i32) -> (i32, i32) {
    %c0_i32 = arith.constant 0 : i32
    %c0_i32_0 = arith.constant 0 : i32
    %c0_i32_1 = arith.constant 0 : i32
    return %c0_i32, %c0_i32_0 : i32, i32
  }
  func.func @transform_6(%arg0: i32) -> (i32, i32) {
    %c0_i32 = arith.constant 0 : i32
    %c0_i32_0 = arith.constant 0 : i32
    %c0_i32_1 = arith.constant 0 : i32
    return %c0_i32, %c0_i32_0 : i32, i32
  }
  func.func @transform_7(%arg0: i32) -> (i32, i32) {
    %c0_i32 = arith.constant 0 : i32
    %c0_i32_0 = arith.constant 0 : i32
    %c0_i32_1 = arith.constant 0 : i32
    return %c0_i32, %c0_i32_0 : i32, i32
  }
  func.func @transform_8(%arg0: i32) -> (i32, i32) {
    %c0_i32 = arith.constant 0 : i32
    %c0_i32_0 = arith.constant 0 : i32
    %c0_i32_1 = arith.constant 0 : i32
    return %c0_i32, %c0_i32_0 : i32, i32
  }
  func.func @transform_9(%arg0: i32) -> (i32, i32) {
    %c0_i32 = arith.constant 0 : i32
    %c0_i32_0 = arith.constant 0 : i32
    return %arg0, %c0_i32 : i32, i32
  }
}

</mosaic_0001>

<llo_original>
// kernel: tpu_custom_call.1
$region0: #{tpu_custom_call.1}
  #allocation0 [shape = 'u32[]', space=smem, size = 0x4, offset = 0x4, fixed_abs, tag = 'smem constant byte address 0x4 - core index']
  #allocation1 [shape = 'u32[144,128]{1,0:T(1,128)}', space=vmem, size = 0x12000, scoped, tag = 'internal scratch']
  %s0 = inlined_call_operand.hbm [shape: bf16[8,24], index: 0, kind: input, shape index: {}]
  %s1 = inlined_call_operand.hbm [shape: bf16[8,8], index: 1, kind: input, shape index: {}]
  %s2 = inlined_call_operand.hbm [shape: bf16[24,64], index: 2, kind: input, shape index: {}]
  %s3 = inlined_call_operand.vmem [shape: bf16[8,64], index: 3, kind: input, shape index: {}]
  %s4 = inlined_call_operand.vmem [shape: f32[1,64], index: 4, kind: input, shape index: {}]
  %s5 = inlined_call_operand.hbm [shape: bf16[64,64], index: 5, kind: input, shape index: {}]
  %s6 = inlined_call_operand.vmem [shape: f32[1,64], index: 6, kind: input, shape index: {}]
  %s7 = inlined_call_operand.hbm [shape: bf16[64,128], index: 7, kind: input, shape index: {}]
  %s8 = inlined_call_operand.vmem [shape: f32[1,128], index: 8, kind: input, shape index: {}]
  %s9 = inlined_call_operand.vmem [shape: f32[8,1], index: 9, kind: output, shape index: {}]
  %s10 = sld [smem:[#allocation0]]
  $region66: #{tpu_custom_call.1} parent=0
    _
  %s12 = ssub.s32 1, %s10
  %s13 = scalar_select 0, %s12, %s10
  $region1: #{tpu_custom_call.1} parent=0
    #allocation2 [shape = 'u8[2048]{0}', space=vmem, size = 0x800, scoped, tag = 'input window, operand 0, single buffered']
    #allocation3 [shape = 's32[1]{0}', space=sflag, size = 0x4, scoped, tag = 'scoped memory for tpu_custom_call.1']
    #allocation4 [shape = 'u8[2048]{0}', space=vmem, size = 0x800, scoped, tag = 'input window, operand 1, single buffered']
    #allocation5 [shape = 's32[1]{0}', space=sflag, size = 0x4, scoped, tag = 'scoped memory for tpu_custom_call.1']
    #allocation6 [shape = 'u8[6144]{0}', space=vmem, size = 0x1800, scoped, tag = 'input window, operand 2, single buffered']
    #allocation7 [shape = 'u8[16384]{0}', space=vmem, size = 0x4000, scoped, tag = 'input window, operand 5, single buffered']
    #allocation8 [shape = 's32[1]{0}', space=sflag, size = 0x4, scoped, tag = 'scoped memory for tpu_custom_call.1']
    #allocation9 [shape = 'u8[16384]{0}', space=vmem, size = 0x4000, scoped, tag = 'input window, operand 7, single buffered']
    %14 = vsyncpa [#allocation3], 0
    %15 = vsyncpa [#allocation5], 0
    %16 = vsyncpa [#allocation8], 0
    // Predicated region
    $region2: #{tpu_custom_call.1} parent=1 // pred_check
      _
    $region3: #{tpu_custom_call.1} parent=1 // pred_check_branch
      %18 = sbr.rel (0) target = $region5
    $region4: #{tpu_custom_call.1} parent=1 // pred_region
      %s20 = ssub.s32 64, 64
      %21 = vsyncadd [#allocation3], %s20
      %s23 = sshll.u32 [#allocation2], 4
      %s24 = int_to_ptr.vmem [resolvable:$true] %s23
      %26 = dma.hbm_to_vmem [thread:$0]  %s0, 64, %s24, [#allocation3]
    $region5: #{tpu_custom_call.1} parent=1 // pred_fallthru
      _
    // Predicated region
    $region6: #{tpu_custom_call.1} parent=1 // pred_check
      _
    $region7: #{tpu_custom_call.1} parent=1 // pred_check_branch
      %28 = sbr.rel (0) target = $region9
    $region8: #{tpu_custom_call.1} parent=1 // pred_region
      %s30 = ssub.s32 64, 64
      %31 = vsyncadd [#allocation5], %s30
      %s33 = sshll.u32 [#allocation4], 4
      %s34 = int_to_ptr.vmem [resolvable:$true] %s33
      %36 = dma.hbm_to_vmem [thread:$0]  %s1, 64, %s34, [#allocation5]
    $region9: #{tpu_custom_call.1} parent=1 // pred_fallthru
      _
    // Predicated region
    $region10: #{tpu_custom_call.1} parent=1 // pred_check
      _
    $region11: #{tpu_custom_call.1} parent=1 // pred_check_branch
      %38 = sbr.rel (0) target = $region13
    $region12: #{tpu_custom_call.1} parent=1 // pred_region
      %s40 = ssub.s32 192, 192
      %41 = vsyncadd [#allocation5], %s40
      %s42 = sshll.u32 [#allocation6], 4
      %s43 = int_to_ptr.vmem [resolvable:$true] %s42
      %48 = dma.hbm_to_vmem [thread:$0]  %s2, 192, %s43, [#allocation5], 64, 64, 4
    $region13: #{tpu_custom_call.1} parent=1 // pred_fallthru
      _
    // Predicated region
    $region14: #{tpu_custom_call.1} parent=1 // pred_check
      _
    $region15: #{tpu_custom_call.1} parent=1 // pred_check_branch
      %50 = sbr.rel (0) target = $region17
    $region16: #{tpu_custom_call.1} parent=1 // pred_region
      _
    $region17: #{tpu_custom_call.1} parent=1 // pred_fallthru
      _
    // Predicated region
    $region18: #{tpu_custom_call.1} parent=1 // pred_check
      _
    $region19: #{tpu_custom_call.1} parent=1 // pred_check_branch
      %52 = sbr.rel (0) target = $region21
    $region20: #{tpu_custom_call.1} parent=1 // pred_region
      _
    $region21: #{tpu_custom_call.1} parent=1 // pred_fallthru
      _
    // Predicated region
    $region22: #{tpu_custom_call.1} parent=1 // pred_check
      _
    $region23: #{tpu_custom_call.1} parent=1 // pred_check_branch
      %54 = sbr.rel (0) target = $region25
    $region24: #{tpu_custom_call.1} parent=1 // pred_region
      %s56 = ssub.s32 512, 512
      %57 = vsyncadd [#allocation8], %s56
      %s58 = sshll.u32 [#allocation7], 4
      %s59 = int_to_ptr.vmem [resolvable:$true] %s58
      %64 = dma.hbm_to_vmem [thread:$0]  %s5, 512, %s59, [#allocation8], 64, 64, 4
    $region25: #{tpu_custom_call.1} parent=1 // pred_fallthru
      _
    // Predicated region
    $region26: #{tpu_custom_call.1} parent=1 // pred_check
      _
    $region27: #{tpu_custom_call.1} parent=1 // pred_check_branch
      %66 = sbr.rel (0) target = $region29
    $region28: #{tpu_custom_call.1} parent=1 // pred_region
      _
    $region29: #{tpu_custom_call.1} parent=1 // pred_fallthru
      _
    // Predicated region
    $region30: #{tpu_custom_call.1} parent=1 // pred_check
      _
    $region31: #{tpu_custom_call.1} parent=1 // pred_check_branch
      %68 = sbr.rel (0) target = $region33
    $region32: #{tpu_custom_call.1} parent=1 // pred_region
      %s70 = ssub.s32 512, 512
      %71 = vsyncadd [#allocation8], %s70
      %s72 = sshll.u32 [#allocation9], 4
      %s73 = int_to_ptr.vmem [resolvable:$true] %s72
      %78 = dma.hbm_to_vmem [thread:$0]  %s7, 512, %s73, [#allocation8], 64, 64, 4
    $region33: #{tpu_custom_call.1} parent=1 // pred_fallthru
      _
    // Predicated region
    $region34: #{tpu_custom_call.1} parent=1 // pred_check
      _
    $region35: #{tpu_custom_call.1} parent=1 // pred_check_branch
      %80 = sbr.rel (0) target = $region37
    $region36: #{tpu_custom_call.1} parent=1 // pred_region
      _
    $region37: #{tpu_custom_call.1} parent=1 // pred_fallthru
      _
    // Predicated region
    $region38: #{tpu_custom_call.1} parent=1 // pred_check
      _
    $region39: #{tpu_custom_call.1} parent=1 // pred_check_branch
      %82 = sbr.rel (0) target = $region41
    $region40: #{tpu_custom_call.1} parent=1 // pred_region
      %83 = dma.done [#allocation3], 64
    $region41: #{tpu_custom_call.1} parent=1 // pred_fallthru
      _
    // Predicated region
    $region42: #{tpu_custom_call.1} parent=1 // pred_check
      _
    $region43: #{tpu_custom_call.1} parent=1 // pred_check_branch
      %85 = sbr.rel (0) target = $region45
    $region44: #{tpu_custom_call.1} parent=1 // pred_region
      %86 = dma.done [#allocation5], 64
    $region45: #{tpu_custom_call.1} parent=1 // pred_fallthru
      _
    // Predicated region
    $region46: #{tpu_custom_call.1} parent=1 // pred_check
      _
    $region47: #{tpu_custom_call.1} parent=1 // pred_check_branch
      %88 = sbr.rel (0) target = $region49
    $region48: #{tpu_custom_call.1} parent=1 // pred_region
      %89 = dma.done [#allocation5], 192
    $region49: #{tpu_custom_call.1} parent=1 // pred_fallthru
      _
    // Predicated region
    $region50: #{tpu_custom_call.1} parent=1 // pred_check
      _
    $region51: #{tpu_custom_call.1} parent=1 // pred_check_branch
      %91 = sbr.rel (0) target = $region53
    $region52: #{tpu_custom_call.1} parent=1 // pred_region
      %92 = dma.done [#allocation8], 512
    $region53: #{tpu_custom_call.1} parent=1 // pred_fallthru
      _
    // Predicated region
    $region54: #{tpu_custom_call.1} parent=1 // pred_check
      _
    $region55: #{tpu_custom_call.1} parent=1 // pred_check_branch
      %94 = sbr.rel (0) target = $region57
    $region56: #{tpu_custom_call.1} parent=1 // pred_region
      %95 = dma.done [#allocation8], 512
    $region57: #{tpu_custom_call.1} parent=1 // pred_fallthru
      _
    %v97 = vld [vmem:[#allocation2] sm:$0xf]
    %v98 = vld [vmem:[#allocation6] sm:$0xf]
    %v99 = vld [vmem:[#allocation6 + $0x4] sm:$0xf]
    %v100 = vld [vmem:[#allocation6 + $0x8] sm:$0xf]
    %v101 = vld [vmem:[#allocation4] sm:$0xf]
    %v102 = vld [vmem:[%s3] sm:$0xf]
    %vm103 = vcmask 64512
    %v105 = vsel %vm103, %v101, 0
    %vm107 = vcmask 1043456
    %v109 = vsel %vm107, %v102, 0
    %111 = vmatprep.subr.bf16.mxu0 0
    %112 = vmatpush1.bf16.msra.mxu0 0
    %113 = vmatprep.subr.bf16.mxu0 0
    %114 = vmatpush1.bf16.msra.mxu0 0
    %115 = vmatprep.subr.bf16.mxu0 0
    %116 = vmatpush1.bf16.msra.mxu0 0
    %117 = vmatprep.subr.bf16.mxu0 0
    %118 = vmatpush1.bf16.msra.mxu0 0
    %119 = vmatprep.subr.bf16.mxu0 0
    %120 = vmatpush1.bf16.msra.mxu0 0
    %121 = vmatprep.subr.bf16.mxu0 0
    %122 = vmatpush1.bf16.msra.mxu0 0
    %123 = vmatprep.subr.bf16.mxu0 0
    %124 = vmatpush1.bf16.msra.mxu0 0
    %125 = vmatprep.subr.bf16.mxu0 0
    %126 = vmatpush1.bf16.msra.mxu0 %v109
    %127 = vmatprep.subr.bf16.mxu0 0
    %128 = vmatpush2.bf16.msra.mxu0 0
    %129 = vmatprep.subr.bf16.mxu0 0
    %130 = vmatpush2.bf16.msra.mxu0 0
    %131 = vmatprep.subr.bf16.mxu0 0
    %132 = vmatpush2.bf16.msra.mxu0 0
    %133 = vmatprep.subr.bf16.mxu0 0
    %134 = vmatpush2.bf16.msra.mxu0 0
    %135 = vmatprep.subr.bf16.mxu0 0
    %136 = vmatpush2.bf16.msra.mxu0 0
    %137 = vmatprep.subr.bf16.mxu0 0
    %138 = vmatpush2.bf16.msra.mxu0 0
    %139 = vmatprep.subr.bf16.mxu0 0
    %140 = vmatpush2.bf16.msra.mxu0 0
    %141 = vmatprep.subr.bf16.mxu0 0
    %142 = vmatpush2.bf16.msra.mxu0 0
    %143 = vmatprep.mubr.bf16.mxu0 0
    %144 = vmatmul.mubr.bf16.gmra.mxu0 %v105
    %v145 = vpop.f32.mrf.mxu0
    %v146 = vadd.f32 0.0, %v145
    %v147 = vpop.f32.mrf.mxu0
    %v148 = vpop.f32.mrf.mxu0
    %v149 = vpop.f32.mrf.mxu0
    %150 = vdwg.mxu0
    %v154 = vunpack.c.l.b16 %v98
    %v155 = vunpack.c.l.b16 %v99
    %v156 = vunpack.c.l.b16 %v100
    %v157 = vpack.c.b16 %v155, %v154
    %v158 = vpack.c.b16 %v156, %v156
    %vm160 = vcmask 195584
    %v162 = vsel %vm160, %v97, 0
    %v165 = vsel %vm107, %v158, 0
    %167 = vmatprep.subr.bf16.mxu0 0
    %168 = vmatpush1.bf16.msra.mxu0 0
    %169 = vmatprep.subr.bf16.mxu0 0
    %170 = vmatpush1.bf16.msra.mxu0 0
    %171 = vmatprep.subr.bf16.mxu0 0
    %172 = vmatpush1.bf16.msra.mxu0 0
    %173 = vmatprep.subr.bf16.mxu0 0
    %174 = vmatpush1.bf16.msra.mxu0 0
    %175 = vmatprep.subr.bf16.mxu0 0
    %176 = vmatpush1.bf16.msra.mxu0 0
    %177 = vmatprep.subr.bf16.mxu0 0
    %178 = vmatpush1.bf16.msra.mxu0 0
    %179 = vmatprep.subr.bf16.mxu0 0
    %180 = vmatpush1.bf16.msra.mxu0 %v165
    %181 = vmatprep.subr.bf16.mxu0 0
    %182 = vmatpush1.bf16.msra.mxu0 %v157
    %183 = vmatprep.subr.bf16.mxu0 0
    %184 = vmatpush2.bf16.msra.mxu0 0
    %185 = vmatprep.subr.bf16.mxu0 0
    %186 = vmatpush2.bf16.msra.mxu0 0
    %187 = vmatprep.subr.bf16.mxu0 0
    %188 = vmatpush2.bf16.msra.mxu0 0
    %189 = vmatprep.subr.bf16.mxu0 0
    %190 = vmatpush2.bf16.msra.mxu0 0
    %191 = vmatprep.subr.bf16.mxu0 0
    %192 = vmatpush2.bf16.msra.mxu0 0
    %193 = vmatprep.subr.bf16.mxu0 0
    %194 = vmatpush2.bf16.msra.mxu0 0
    %195 = vmatprep.subr.bf16.mxu0 0
    %196 = vmatpush2.bf16.msra.mxu0 0
    %197 = vmatprep.subr.bf16.mxu0 0
    %198 = vmatpush2.bf16.msra.mxu0 0
    %199 = vmatprep.mubr.bf16.mxu0 0
    %200 = vmatmul.mubr.bf16.gmra.mxu0 %v162
    %v201 = vpop.f32.mrf.mxu0
    %v202 = vadd.f32 %v146, %v201
    %v203 = vpop.f32.mrf.mxu0
    %v204 = vpop.f32.mrf.mxu0
    %v205 = vpop.f32.mrf.mxu0
    %206 = vdwg.mxu0
    %v207 = vld [vmem:[%s4] sm:$0x1]
    %v209 = vlaneseq
    %v210 = vshrl.u32 %v209, 7
    %v211 = vsub.s32 0, %v210
    %v212 = vrot.slane %v207, %v211
    %v214 = vadd.f32 %v202, %v212
    %v215 = vmax.f32 %v214, 0.0
    %v216 = vld [vmem:[#allocation7] sm:$0xf]
    %v217 = vld [vmem:[#allocation7 + $0x4] sm:$0xf]
    %v218 = vld [vmem:[#allocation7 + $0x8] sm:$0xf]
    %v219 = vld [vmem:[#allocation7 + $0xc] sm:$0xf]
    %v220 = vld [vmem:[#allocation7 + $0x10] sm:$0xf]
    %v221 = vld [vmem:[#allocation7 + $0x14] sm:$0xf]
    %v222 = vld [vmem:[#allocation7 + $0x18] sm:$0xf]
    %v223 = vld [vmem:[#allocation7 + $0x1c] sm:$0xf]
    %v224 = vld [vmem:[%s6] sm:$0x1]
    %v225 = vpack.c.bf16 %v215, %v215
    %v227 = vlaneseq
    %v228 = vshrl.u32 %v227, 7
    %v229 = vsub.s32 0, %v228
    %v230 = vrot.slane %v224, %v229
    %v240 = vunpack.c.l.b16 %v216
    %v241 = vunpack.c.l.b16 %v217
    %v242 = vunpack.c.l.b16 %v218
    %v243 = vunpack.c.l.b16 %v219
    %v244 = vunpack.c.l.b16 %v220
    %v245 = vunpack.c.l.b16 %v221
    %v246 = vunpack.c.l.b16 %v222
    %v247 = vunpack.c.l.b16 %v223
    %v248 = vpack.c.b16 %v241, %v240
    %v249 = vpack.c.b16 %v243, %v242
    %v250 = vpack.c.b16 %v245, %v244
    %v251 = vpack.c.b16 %v247, %v246
    %vm256 = vcmask 523264
    %v258 = vsel %vm256, %v225, 0
    %260 = vmatprep.subr.bf16.mxu0 0
    %261 = vmatpush1.bf16.msra.mxu0 0
    %262 = vmatprep.subr.bf16.mxu0 0
    %263 = vmatpush1.bf16.msra.mxu0 0
    %264 = vmatprep.subr.bf16.mxu0 0
    %265 = vmatpush1.bf16.msra.mxu0 0
    %266 = vmatprep.subr.bf16.mxu0 0
    %267 = vmatpush1.bf16.msra.mxu0 0
    %268 = vmatprep.subr.bf16.mxu0 0
    %269 = vmatpush1.bf16.msra.mxu0 %v251
    %270 = vmatprep.subr.bf16.mxu0 0
    %271 = vmatpush1.bf16.msra.mxu0 %v250
    %272 = vmatprep.subr.bf16.mxu0 0
    %273 = vmatpush1.bf16.msra.mxu0 %v249
    %274 = vmatprep.subr.bf16.mxu0 0
    %275 = vmatpush1.bf16.msra.mxu0 %v248
    %276 = vmatprep.subr.bf16.mxu0 0
    %277 = vmatpush2.bf16.msra.mxu0 0
    %278 = vmatprep.subr.bf16.mxu0 0
    %279 = vmatpush2.bf16.msra.mxu0 0
    %280 = vmatprep.subr.bf16.mxu0 0
    %281 = vmatpush2.bf16.msra.mxu0 0
    %282 = vmatprep.subr.bf16.mxu0 0
    %283 = vmatpush2.bf16.msra.mxu0 0
    %284 = vmatprep.subr.bf16.mxu0 0
    %285 = vmatpush2.bf16.msra.mxu0 0
    %286 = vmatprep.subr.bf16.mxu0 0
    %287 = vmatpush2.bf16.msra.mxu0 0
    %288 = vmatprep.subr.bf16.mxu0 0
    %289 = vmatpush2.bf16.msra.mxu0 0
    %290 = vmatprep.subr.bf16.mxu0 0
    %291 = vmatpush2.bf16.msra.mxu0 0
    %292 = vmatprep.mubr.bf16.mxu0 0
    %293 = vmatmul.mubr.bf16.gmra.mxu0 %v258
    %v294 = vpop.f32.mrf.mxu0
    %v295 = vadd.f32 %v230, %v294
    %v296 = vpop.f32.mrf.mxu0
    %v297 = vpop.f32.mrf.mxu0
    %v298 = vpop.f32.mrf.mxu0
    %299 = vdwg.mxu0
    %v300 = vmax.f32 %v295, 0.0
    %v301 = vld [vmem:[#allocation9] sm:$0xf]
    %v302 = vld [vmem:[#allocation9 + $0x4] sm:$0xf]
    %v303 = vld [vmem:[#allocation9 + $0x8] sm:$0xf]
    %v304 = vld [vmem:[#allocation9 + $0xc] sm:$0xf]
    %v305 = vld [vmem:[#allocation9 + $0x10] sm:$0xf]
    %v306 = vld [vmem:[#allocation9 + $0x14] sm:$0xf]
    %v307 = vld [vmem:[#allocation9 + $0x18] sm:$0xf]
    %v308 = vld [vmem:[#allocation9 + $0x1c] sm:$0xf]
    %v309 = vpack.c.bf16 %v300, %v300
    %v310 = vld [vmem:[%s8] sm:$0x1]
    %v312 = vlaneseq
    %v313 = vshrl.u32 %v312, 7
    %v314 = vsub.s32 0, %v313
    %v315 = vrot.slane %v310, %v314
    %v325 = vunpack.c.l.b16 %v301
    %v326 = vunpack.c.l.b16 %v302
    %v327 = vunpack.c.l.b16 %v303
    %v328 = vunpack.c.l.b16 %v304
    %v329 = vunpack.c.l.b16 %v305
    %v330 = vunpack.c.l.b16 %v306
    %v331 = vunpack.c.l.b16 %v307
    %v332 = vunpack.c.l.b16 %v308
    %v333 = vpack.c.b16 %v326, %v325
    %v334 = vpack.c.b16 %v328, %v327
    %v335 = vpack.c.b16 %v330, %v329
    %v336 = vpack.c.b16 %v332, %v331
    %v342 = vsel %vm256, %v309, 0
    %344 = vmatprep.subr.bf16.mxu0 0
    %345 = vmatpush1.bf16.msra.mxu0 0
    %346 = vmatprep.subr.bf16.mxu0 0
    %347 = vmatpush1.bf16.msra.mxu0 0
    %348 = vmatprep.subr.bf16.mxu0 0
    %349 = vmatpush1.bf16.msra.mxu0 0
    %350 = vmatprep.subr.bf16.mxu0 0
    %351 = vmatpush1.bf16.msra.mxu0 0
    %352 = vmatprep.subr.bf16.mxu0 0
    %353 = vmatpush1.bf16.msra.mxu0 %v336
    %354 = vmatprep.subr.bf16.mxu0 0
    %355 = vmatpush1.bf16.msra.mxu0 %v335
    %356 = vmatprep.subr.bf16.mxu0 0
    %357 = vmatpush1.bf16.msra.mxu0 %v334
    %358 = vmatprep.subr.bf16.mxu0 0
    %359 = vmatpush1.bf16.msra.mxu0 %v333
    %360 = vmatprep.subr.bf16.mxu0 0
    %361 = vmatpush2.bf16.msra.mxu0 0
    %362 = vmatprep.subr.bf16.mxu0 0
    %363 = vmatpush2.bf16.msra.mxu0 0
    %364 = vmatprep.subr.bf16.mxu0 0
    %365 = vmatpush2.bf16.msra.mxu0 0
    %366 = vmatprep.subr.bf16.mxu0 0
    %367 = vmatpush2.bf16.msra.mxu0 0
    %368 = vmatprep.subr.bf16.mxu0 0
    %369 = vmatpush2.bf16.msra.mxu0 0
    %370 = vmatprep.subr.bf16.mxu0 0
    %371 = vmatpush2.bf16.msra.mxu0 0
    %372 = vmatprep.subr.bf16.mxu0 0
    %373 = vmatpush2.bf16.msra.mxu0 0
    %374 = vmatprep.subr.bf16.mxu0 0
    %375 = vmatpush2.bf16.msra.mxu0 0
    %376 = vmatprep.mubr.bf16.mxu0 0
    %377 = vmatmul.mubr.bf16.gmra.mxu0 %v342
    %v378 = vpop.f32.mrf.mxu0
    %v379 = vadd.f32 %v315, %v378
    %v380 = vpop.f32.mrf.mxu0
    %v381 = vpop.f32.mrf.mxu0
    %v382 = vpop.f32.mrf.mxu0
    %383 = vdwg.mxu0
    %384 = vmin.xlane.f32.xlu0 %v379
    %v385 = vpop.xlane.xlu0 %384
    %vm386 = vcmask 7168
    %387 = vst.msk [vmem:[%s9] sm:$0xff] %vm386, %v385
    // Predicated region
    $region58: #{tpu_custom_call.1} parent=1 // pred_check
      _
    $region59: #{tpu_custom_call.1} parent=1 // pred_check_branch
      %389 = sbr.rel (0) target = $region61
    $region60: #{tpu_custom_call.1} parent=1 // pred_region
      _
    $region61: #{tpu_custom_call.1} parent=1 // pred_fallthru
      _
    // Predicated region
    $region62: #{tpu_custom_call.1} parent=1 // pred_check
      _
    $region63: #{tpu_custom_call.1} parent=1 // pred_check_branch
      %391 = sbr.rel (0) target = $region65
    $region64: #{tpu_custom_call.1} parent=1 // pred_region
      _
    $region65: #{tpu_custom_call.1} parent=1 // pred_fallthru
      _
    %392 = vsyncpa [#allocation3], 1
    %393 = vsyncpa [#allocation5], 1
    %394 = vsyncpa [#allocation8], 1

</llo_original>
